<compile_context>
chip_gen: v7x
topology: tpu7x:2x2x1
jax: 0.10.0
libtpu: 0.0.40
codegen_flags: <defaults>
</compile_context>

<pallas_src>
import functools
import math

import jax
import jax.numpy as jnp
import numpy as np
from jax.experimental import pallas as pl
from jax.experimental.pallas import tpu as pltpu


# ----------------------------- Pallas kernel ---------------------------------

def _make_dwconv3x3_kernel(H, W):
    def kernel(x_ref, w_ref, b_ref, o_ref, xp_ref):
        # x_ref / o_ref : (tB, 1 + H*W, tC)  channel-last token layout
        # w_ref         : (9, tC)            taps, [ky*3 + kx, c] = torch_w[c, 0, ky, kx]
        # b_ref         : (1, tC)
        # xp_ref        : (tB, H+2, W+2, tC) VMEM scratch: in-kernel zero-padded halo
        tb = x_ref.shape[0]
        tc = x_ref.shape[2]

        # fused time-token passthrough (replaces the XLA concat HBM pass)
        o_ref[:, 0:1, :] = x_ref[:, 0:1, :]

        # fused 3x3 halo pad, built in VMEM (replaces the XLA jnp.pad HBM pass)
        xp_ref[...] = jnp.zeros_like(xp_ref)
        for h in range(H):
            xp_ref[:, h + 1, 1:W + 1, :] = x_ref[:, 1 + h * W:1 + (h + 1) * W, :]

        # depthwise 3x3 accumulation; accumulator starts as the bias broadcast
        acc = jnp.broadcast_to(b_ref[0, :].astype(jnp.float32), (tb, H, W, tc))
        for kx in range(3):
            # hoist the sublane-axis (W) shift: 3 shifted loads instead of 9;
            # slicing along H afterwards is free (whole (W, C) planes).
            xk = xp_ref[:, :, kx:kx + W, :].astype(jnp.float32)   # (tB, H+2, W, tC)
            for ky in range(3):
                acc = acc + xk[:, ky:ky + H, :, :] * w_ref[ky * 3 + kx, :]

        # store conv result at token offset 1 (lane-dense; pure VMEM-side row copies)
        for h in range(H):
            o_ref[:, 1 + h * W:1 + (h + 1) * W, :] = acc[:, h].astype(o_ref.dtype)

    return kernel


# ----------------------------- tiling heuristics ------------------------------

def _tpu_vmem_capacity_bytes():
    try:
        return int(pltpu.get_tpu_info().vmem_capacity_bytes)
    except Exception:
        return 64 << 20          # conservative fallback: v7x per-TensorCore VMEM


def _pick_tiles(B, N, H, W, C, itemsize):
    """Channel tile tC (lane-dense), batch tile tB, and a vmem_limit covering the
    whole BlockSpec pipeline (double-buffered in+out blocks + halo scratch + acc)."""
    capacity = _tpu_vmem_capacity_bytes()
    # ~3/8 of physical VMEM (≈24 MiB on v7x, capped at 45 MiB on v5e/v6e) leaves
    # headroom for compiler temporaries and register spills.
    budget = min(capacity * 3 // 8, 45 << 20)

    def step_bytes(tb, tc):
        io_blk = tb * N * tc * itemsize                    # input block
        out_blk = tb * N * tc * itemsize                   # output block
        halo = tb * (H + 2) * (W + 2) * tc * itemsize      # in-kernel padded scratch
        acc = tb * H * W * tc * 4                          # f32 accumulator value
        shifted = tb * (H + 2) * W * tc * 4                # one hoisted kx view
        # in/out blocks are double-buffered by the BlockSpec pipeline
        return 2 * (io_blk + out_blk) + halo + acc + shifted + 10 * tc * 4

    if C % 128 == 0:
        tc = 128
        while C % (tc * 2) == 0 and step_bytes(1, tc * 2) <= budget:
            tc *= 2
    else:
        # TODO(synk): for C < 128 / non-multiples of 128, fold a spatial factor onto
        # the lane axis to keep stores unmasked; here we take the whole channel axis.
        tc = C

    # Pack several images per block for tiny spatial stages (amortizes the ~0.35us
    # per-grid-step overhead and the sublane padding of small W), but keep blocks
    # small enough (<=2 MiB) that larger problems still get a long, pipelined grid.
    tb = 1
    while (tb * 2) <= B and B % (tb * 2) == 0 \
            and step_bytes(tb * 2, tc) <= budget \
            and (tb * 2) * N * tc * itemsize <= (2 << 20):
        tb *= 2

    need = step_bytes(tb, tc)
    vmem_limit = int(min(max(need * 3 // 2, 32 << 20), capacity - (4 << 20)))
    return tb, tc, vmem_limit


# ----------------------------- wrapper ----------------------------------------

def dwconv_forward(x, params, H, W):
    """Equivalent of DWConv.forward(x, H, W) with x: (B, N, C), N = 1 + H*W."""
    B, N, C = x.shape
    assert N == 1 + H * W

    w = params["w_kkc"]                # (9, C)
    b = params["bias"]                 # (1, C)

    itemsize = jnp.dtype(x.dtype).itemsize
    tb, tc, vmem_limit = _pick_tiles(B, N, H, W, C, itemsize)

    return pl.pallas_call(
        _make_dwconv3x3_kernel(H, W),
        out_shape=jax.ShapeDtypeStruct((B, N, C), x.dtype),
        grid=(B // tb, C // tc),
        in_specs=[
            pl.BlockSpec((tb, N, tc), lambda bi, ci: (bi, 0, ci)),
            pl.BlockSpec((9, tc), lambda bi, ci: (0, ci)),
            pl.BlockSpec((1, tc), lambda bi, ci: (0, ci)),
        ],
        out_specs=pl.BlockSpec((tb, N, tc), lambda bi, ci: (bi, 0, ci)),
        scratch_shapes=[pltpu.VMEM((tb, H + 2, W + 2, tc), x.dtype)],
        compiler_params=pltpu.CompilerParams(
            dimension_semantics=("parallel", "parallel"),
            vmem_limit_bytes=vmem_limit,
        ),
    )(x, w, b)


# ----------------------------- deterministic parameters ----------------------

def init_params(key, dim):
    kw, kb = jax.random.split(key)
    # torch Conv2d(dim, dim, 3, 1, 1, bias=True, groups=dim): weight (dim,1,3,3), bias (dim,)
    w = (1.0 / math.sqrt(9.0)) * jax.random.normal(kw, (dim, 3, 3), jnp.float32)
    w_kkc = w.transpose(1, 2, 0).reshape(9, dim)        # [ky*3+kx, c] = torch_w[c, 0, ky, kx]
    bias = 0.1 * jax.random.normal(kb, (1, dim), jnp.float32)
    return {"w_kkc": w_kkc, "bias": bias}


# ----------------------------- pure-JAX reference ----------------------------

def _reference(x, params, H, W):
    B, N, C = x.shape
    xs = x[:, 1:, :].reshape(B, H, W, C)
    xp = jnp.pad(xs, ((0, 0), (1, 1), (1, 1), (0, 0)))
    acc = jnp.zeros((B, H, W, C), jnp.float32)
    for ky in range(3):
        for kx in range(3):
            acc = acc + xp[:, ky:ky + H, kx:kx + W, :] * params["w_kkc"][ky * 3 + kx, :]
    acc = acc + params["bias"][0, :]
    return jnp.concatenate([x[:, 0:1, :], acc.reshape(B, H * W, C).astype(x.dtype)], axis=1)


if __name__ == "__main__":
    B, H, W = 2, 8, 8
    dim = 16
    N = 1 + H * W

    key = jax.random.PRNGKey(0)
    kx_, kp = jax.random.split(key)
    x = jax.random.normal(kx_, (B, N, dim), jnp.float32)
    params = init_params(kp, dim)

    fwd = jax.jit(functools.partial(dwconv_forward, H=H, W=W))
    out = fwd(x, params)
    jax.block_until_ready(out)

    assert out.shape == (B, N, dim) and out.dtype == jnp.float32
    ref = _reference(x, params, H, W)
    assert np.allclose(np.asarray(out), np.asarray(ref), atol=1e-4, rtol=1e-4)
    print("KERNEL_OK")
</pallas_src>

<mosaic_0001>
module attributes {stable_mosaic.version = 11 : i64} {
  func.func @kernel(%arg0: i32, %arg1: i32, %arg2: memref<2x65x16xf32, #tpu.memory_space<vmem>>, %arg3: memref<9x16xf32, #tpu.memory_space<vmem>>, %arg4: memref<1x16xf32, #tpu.memory_space<vmem>>, %arg5: memref<2x65x16xf32, #tpu.memory_space<vmem>>, %arg6: memref<2x10x10x16xf32, #tpu.memory_space<vmem>>) attributes {dimension_semantics = [#tpu.dimension_semantics<parallel>, #tpu.dimension_semantics<parallel>], iteration_bounds = array<i64: 1, 1>, scalar_prefetch = 0 : i64, scratch_operands = 1 : i64, tpu.core_type = #tpu.core_type<tc>, window_params = [{transform_indices = @transform_0, window_bounds = array<i64: 2, 65, 16>}, {transform_indices = @transform_1, window_bounds = array<i64: 9, 16>}, {transform_indices = @transform_2, window_bounds = array<i64: 1, 16>}, {transform_indices = @transform_3, window_bounds = array<i64: 2, 65, 16>}]} {
    %c0 = arith.constant 0 : index
    %c0_0 = arith.constant 0 : index
    %c0_1 = arith.constant 0 : index
    %0 = vector.load %arg2[%c0, %c0_0, %c0_1] : memref<2x65x16xf32, #tpu.memory_space<vmem>>, vector<2x1x16xf32>
    %c0_2 = arith.constant 0 : index
    %c0_3 = arith.constant 0 : index
    %c0_4 = arith.constant 0 : index
    %1 = vector.load %arg5[%c0_2, %c0_3, %c0_4] : memref<2x65x16xf32, #tpu.memory_space<vmem>>, vector<2x1x16xf32>
    tpu.vector_store %arg5[%c0_2, %c0_3, %c0_4], %0 {strides = array<i32>} : memref<2x65x16xf32, #tpu.memory_space<vmem>>, vector<2x1x16xf32>,
    %cst = arith.constant 0.000000e+00 : f32
    %2 = vector.broadcast %cst : f32 to vector<2x10x10x16xf32>
    %c0_5 = arith.constant 0 : index
    %c0_6 = arith.constant 0 : index
    %c0_7 = arith.constant 0 : index
    %c0_8 = arith.constant 0 : index
    %3 = vector.load %arg6[%c0_5, %c0_6, %c0_7, %c0_8] : memref<2x10x10x16xf32, #tpu.memory_space<vmem>>, vector<2x10x10x16xf32>
    tpu.vector_store %arg6[%c0_5, %c0_6, %c0_7, %c0_8], %2 {strides = array<i32>} : memref<2x10x10x16xf32, #tpu.memory_space<vmem>>, vector<2x10x10x16xf32>,
    %c0_9 = arith.constant 0 : index
    %c1 = arith.constant 1 : index
    %c0_10 = arith.constant 0 : index
    %4 = vector.load %arg2[%c0_9, %c1, %c0_10] : memref<2x65x16xf32, #tpu.memory_space<vmem>>, vector<2x8x16xf32>
    %c0_11 = arith.constant 0 : index
    %c1_12 = arith.constant 1 : index
    %c1_13 = arith.constant 1 : index
    %c0_14 = arith.constant 0 : index
    %5 = vector.load %arg6[%c0_11, %c1_12, %c1_13, %c0_14] : memref<2x10x10x16xf32, #tpu.memory_space<vmem>>, vector<2x1x8x16xf32>
    %6 = vector.shape_cast %5 : vector<2x1x8x16xf32> to vector<2x8x16xf32>
    %7 = vector.shape_cast %4 : vector<2x8x16xf32> to vector<2x1x8x16xf32>
    tpu.vector_store %arg6[%c0_11, %c1_12, %c1_13, %c0_14], %7 {strides = array<i32>} : memref<2x10x10x16xf32, #tpu.memory_space<vmem>>, vector<2x1x8x16xf32>,
    %c0_15 = arith.constant 0 : index
    %c9 = arith.constant 9 : index
    %c0_16 = arith.constant 0 : index
    %8 = vector.load %arg2[%c0_15, %c9, %c0_16] : memref<2x65x16xf32, #tpu.memory_space<vmem>>, vector<2x8x16xf32>
    %c0_17 = arith.constant 0 : index
    %c2 = arith.constant 2 : index
    %c1_18 = arith.constant 1 : index
    %c0_19 = arith.constant 0 : index
    %9 = vector.load %arg6[%c0_17, %c2, %c1_18, %c0_19] : memref<2x10x10x16xf32, #tpu.memory_space<vmem>>, vector<2x1x8x16xf32>
    %10 = vector.shape_cast %9 : vector<2x1x8x16xf32> to vector<2x8x16xf32>
    %11 = vector.shape_cast %8 : vector<2x8x16xf32> to vector<2x1x8x16xf32>
    tpu.vector_store %arg6[%c0_17, %c2, %c1_18, %c0_19], %11 {strides = array<i32>} : memref<2x10x10x16xf32, #tpu.memory_space<vmem>>, vector<2x1x8x16xf32>,
    %c0_20 = arith.constant 0 : index
    %c17 = arith.constant 17 : index
    %c0_21 = arith.constant 0 : index
    %12 = vector.load %arg2[%c0_20, %c17, %c0_21] : memref<2x65x16xf32, #tpu.memory_space<vmem>>, vector<2x8x16xf32>
    %c0_22 = arith.constant 0 : index
    %c3 = arith.constant 3 : index
    %c1_23 = arith.constant 1 : index
    %c0_24 = arith.constant 0 : index
    %13 = vector.load %arg6[%c0_22, %c3, %c1_23, %c0_24] : memref<2x10x10x16xf32, #tpu.memory_space<vmem>>, vector<2x1x8x16xf32>
    %14 = vector.shape_cast %13 : vector<2x1x8x16xf32> to vector<2x8x16xf32>
    %15 = vector.shape_cast %12 : vector<2x8x16xf32> to vector<2x1x8x16xf32>
    tpu.vector_store %arg6[%c0_22, %c3, %c1_23, %c0_24], %15 {strides = array<i32>} : memref<2x10x10x16xf32, #tpu.memory_space<vmem>>, vector<2x1x8x16xf32>,
    %c0_25 = arith.constant 0 : index
    %c25 = arith.constant 25 : index
    %c0_26 = arith.constant 0 : index
    %16 = vector.load %arg2[%c0_25, %c25, %c0_26] : memref<2x65x16xf32, #tpu.memory_space<vmem>>, vector<2x8x16xf32>
    %c0_27 = arith.constant 0 : index
    %c4 = arith.constant 4 : index
    %c1_28 = arith.constant 1 : index
    %c0_29 = arith.constant 0 : index
    %17 = vector.load %arg6[%c0_27, %c4, %c1_28, %c0_29] : memref<2x10x10x16xf32, #tpu.memory_space<vmem>>, vector<2x1x8x16xf32>
    %18 = vector.shape_cast %17 : vector<2x1x8x16xf32> to vector<2x8x16xf32>
    %19 = vector.shape_cast %16 : vector<2x8x16xf32> to vector<2x1x8x16xf32>
    tpu.vector_store %arg6[%c0_27, %c4, %c1_28, %c0_29], %19 {strides = array<i32>} : memref<2x10x10x16xf32, #tpu.memory_space<vmem>>, vector<2x1x8x16xf32>,
    %c0_30 = arith.constant 0 : index
    %c33 = arith.constant 33 : index
    %c0_31 = arith.constant 0 : index
    %20 = vector.load %arg2[%c0_30, %c33, %c0_31] : memref<2x65x16xf32, #tpu.memory_space<vmem>>, vector<2x8x16xf32>
    %c0_32 = arith.constant 0 : index
    %c5 = arith.constant 5 : index
    %c1_33 = arith.constant 1 : index
    %c0_34 = arith.constant 0 : index
    %21 = vector.load %arg6[%c0_32, %c5, %c1_33, %c0_34] : memref<2x10x10x16xf32, #tpu.memory_space<vmem>>, vector<2x1x8x16xf32>
    %22 = vector.shape_cast %21 : vector<2x1x8x16xf32> to vector<2x8x16xf32>
    %23 = vector.shape_cast %20 : vector<2x8x16xf32> to vector<2x1x8x16xf32>
    tpu.vector_store %arg6[%c0_32, %c5, %c1_33, %c0_34], %23 {strides = array<i32>} : memref<2x10x10x16xf32, #tpu.memory_space<vmem>>, vector<2x1x8x16xf32>,
    %c0_35 = arith.constant 0 : index
    %c41 = arith.constant 41 : index
    %c0_36 = arith.constant 0 : index
    %24 = vector.load %arg2[%c0_35, %c41, %c0_36] : memref<2x65x16xf32, #tpu.memory_space<vmem>>, vector<2x8x16xf32>
    %c0_37 = arith.constant 0 : index
    %c6 = arith.constant 6 : index
    %c1_38 = arith.constant 1 : index
    %c0_39 = arith.constant 0 : index
    %25 = vector.load %arg6[%c0_37, %c6, %c1_38, %c0_39] : memref<2x10x10x16xf32, #tpu.memory_space<vmem>>, vector<2x1x8x16xf32>
    %26 = vector.shape_cast %25 : vector<2x1x8x16xf32> to vector<2x8x16xf32>
    %27 = vector.shape_cast %24 : vector<2x8x16xf32> to vector<2x1x8x16xf32>
    tpu.vector_store %arg6[%c0_37, %c6, %c1_38, %c0_39], %27 {strides = array<i32>} : memref<2x10x10x16xf32, #tpu.memory_space<vmem>>, vector<2x1x8x16xf32>,
    %c0_40 = arith.constant 0 : index
    %c49 = arith.constant 49 : index
    %c0_41 = arith.constant 0 : index
    %28 = vector.load %arg2[%c0_40, %c49, %c0_41] : memref<2x65x16xf32, #tpu.memory_space<vmem>>, vector<2x8x16xf32>
    %c0_42 = arith.constant 0 : index
    %c7 = arith.constant 7 : index
    %c1_43 = arith.constant 1 : index
    %c0_44 = arith.constant 0 : index
    %29 = vector.load %arg6[%c0_42, %c7, %c1_43, %c0_44] : memref<2x10x10x16xf32, #tpu.memory_space<vmem>>, vector<2x1x8x16xf32>
    %30 = vector.shape_cast %29 : vector<2x1x8x16xf32> to vector<2x8x16xf32>
    %31 = vector.shape_cast %28 : vector<2x8x16xf32> to vector<2x1x8x16xf32>
    tpu.vector_store %arg6[%c0_42, %c7, %c1_43, %c0_44], %31 {strides = array<i32>} : memref<2x10x10x16xf32, #tpu.memory_space<vmem>>, vector<2x1x8x16xf32>,
    %c0_45 = arith.constant 0 : index
    %c57 = arith.constant 57 : index
    %c0_46 = arith.constant 0 : index
    %32 = vector.load %arg2[%c0_45, %c57, %c0_46] : memref<2x65x16xf32, #tpu.memory_space<vmem>>, vector<2x8x16xf32>
    %c0_47 = arith.constant 0 : index
    %c8 = arith.constant 8 : index
    %c1_48 = arith.constant 1 : index
    %c0_49 = arith.constant 0 : index
    %33 = vector.load %arg6[%c0_47, %c8, %c1_48, %c0_49] : memref<2x10x10x16xf32, #tpu.memory_space<vmem>>, vector<2x1x8x16xf32>
    %34 = vector.shape_cast %33 : vector<2x1x8x16xf32> to vector<2x8x16xf32>
    %35 = vector.shape_cast %32 : vector<2x8x16xf32> to vector<2x1x8x16xf32>
    tpu.vector_store %arg6[%c0_47, %c8, %c1_48, %c0_49], %35 {strides = array<i32>} : memref<2x10x10x16xf32, #tpu.memory_space<vmem>>, vector<2x1x8x16xf32>,
    %c0_50 = arith.constant 0 : index
    %c0_51 = arith.constant 0 : index
    %36 = vector.load %arg4[%c0_50, %c0_51] : memref<1x16xf32, #tpu.memory_space<vmem>>, vector<1x16xf32>
    %37 = vector.shape_cast %36 : vector<1x16xf32> to vector<16xf32>
    %38 = vector.shape_cast %37 : vector<16xf32> to vector<1x1x1x16xf32>
    %39 = vector.broadcast %38 : vector<1x1x1x16xf32> to vector<2x8x8x16xf32>
    %c0_52 = arith.constant 0 : index
    %c0_53 = arith.constant 0 : index
    %c0_54 = arith.constant 0 : index
    %c0_55 = arith.constant 0 : index
    %40 = vector.load %arg6[%c0_52, %c0_53, %c0_54, %c0_55] : memref<2x10x10x16xf32, #tpu.memory_space<vmem>>, vector<2x10x8x16xf32>
    %41 = vector.extract_strided_slice %40 {offsets = [0, 0, 0, 0], sizes = [2, 8, 8, 16], strides = [1, 1, 1, 1]} : vector<2x10x8x16xf32> to vector<2x8x8x16xf32>
    %c0_56 = arith.constant 0 : index
    %c0_57 = arith.constant 0 : index
    %42 = vector.load %arg3[%c0_56, %c0_57] : memref<9x16xf32, #tpu.memory_space<vmem>>, vector<1x16xf32>
    %43 = vector.shape_cast %42 : vector<1x16xf32> to vector<16xf32>
    %44 = vector.shape_cast %43 : vector<16xf32> to vector<1x1x1x16xf32>
    %45 = vector.broadcast %44 : vector<1x1x1x16xf32> to vector<2x8x8x16xf32>
    %46 = arith.mulf %41, %45 : vector<2x8x8x16xf32>
    %47 = arith.addf %39, %46 : vector<2x8x8x16xf32>
    %48 = vector.extract_strided_slice %40 {offsets = [0, 1, 0, 0], sizes = [2, 8, 8, 16], strides = [1, 1, 1, 1]} : vector<2x10x8x16xf32> to vector<2x8x8x16xf32>
    %c3_58 = arith.constant 3 : index
    %c0_59 = arith.constant 0 : index
    %49 = vector.load %arg3[%c3_58, %c0_59] : memref<9x16xf32, #tpu.memory_space<vmem>>, vector<1x16xf32>
    %50 = vector.shape_cast %49 : vector<1x16xf32> to vector<16xf32>
    %51 = vector.shape_cast %50 : vector<16xf32> to vector<1x1x1x16xf32>
    %52 = vector.broadcast %51 : vector<1x1x1x16xf32> to vector<2x8x8x16xf32>
    %53 = arith.mulf %48, %52 : vector<2x8x8x16xf32>
    %54 = arith.addf %47, %53 : vector<2x8x8x16xf32>
    %55 = vector.extract_strided_slice %40 {offsets = [0, 2, 0, 0], sizes = [2, 8, 8, 16], strides = [1, 1, 1, 1]} : vector<2x10x8x16xf32> to vector<2x8x8x16xf32>
    %c6_60 = arith.constant 6 : index
    %c0_61 = arith.constant 0 : index
    %56 = vector.load %arg3[%c6_60, %c0_61] : memref<9x16xf32, #tpu.memory_space<vmem>>, vector<1x16xf32>
    %57 = vector.shape_cast %56 : vector<1x16xf32> to vector<16xf32>
    %58 = vector.shape_cast %57 : vector<16xf32> to vector<1x1x1x16xf32>
    %59 = vector.broadcast %58 : vector<1x1x1x16xf32> to vector<2x8x8x16xf32>
    %60 = arith.mulf %55, %59 : vector<2x8x8x16xf32>
    %61 = arith.addf %54, %60 : vector<2x8x8x16xf32>
    %c0_62 = arith.constant 0 : index
    %c0_63 = arith.constant 0 : index
    %c1_64 = arith.constant 1 : index
    %c0_65 = arith.constant 0 : index
    %62 = vector.load %arg6[%c0_62, %c0_63, %c1_64, %c0_65] : memref<2x10x10x16xf32, #tpu.memory_space<vmem>>, vector<2x10x8x16xf32>
    %63 = vector.extract_strided_slice %62 {offsets = [0, 0, 0, 0], sizes = [2, 8, 8, 16], strides = [1, 1, 1, 1]} : vector<2x10x8x16xf32> to vector<2x8x8x16xf32>
    %c1_66 = arith.constant 1 : index
    %c0_67 = arith.constant 0 : index
    %64 = vector.load %arg3[%c1_66, %c0_67] : memref<9x16xf32, #tpu.memory_space<vmem>>, vector<1x16xf32>
    %65 = vector.shape_cast %64 : vector<1x16xf32> to vector<16xf32>
    %66 = vector.shape_cast %65 : vector<16xf32> to vector<1x1x1x16xf32>
    %67 = vector.broadcast %66 : vector<1x1x1x16xf32> to vector<2x8x8x16xf32>
    %68 = arith.mulf %63, %67 : vector<2x8x8x16xf32>
    %69 = arith.addf %61, %68 : vector<2x8x8x16xf32>
    %70 = vector.extract_strided_slice %62 {offsets = [0, 1, 0, 0], sizes = [2, 8, 8, 16], strides = [1, 1, 1, 1]} : vector<2x10x8x16xf32> to vector<2x8x8x16xf32>
    %c4_68 = arith.constant 4 : index
    %c0_69 = arith.constant 0 : index
    %71 = vector.load %arg3[%c4_68, %c0_69] : memref<9x16xf32, #tpu.memory_space<vmem>>, vector<1x16xf32>
    %72 = vector.shape_cast %71 : vector<1x16xf32> to vector<16xf32>
    %73 = vector.shape_cast %72 : vector<16xf32> to vector<1x1x1x16xf32>
    %74 = vector.broadcast %73 : vector<1x1x1x16xf32> to vector<2x8x8x16xf32>
    %75 = arith.mulf %70, %74 : vector<2x8x8x16xf32>
    %76 = arith.addf %69, %75 : vector<2x8x8x16xf32>
    %77 = vector.extract_strided_slice %62 {offsets = [0, 2, 0, 0], sizes = [2, 8, 8, 16], strides = [1, 1, 1, 1]} : vector<2x10x8x16xf32> to vector<2x8x8x16xf32>
    %c7_70 = arith.constant 7 : index
    %c0_71 = arith.constant 0 : index
    %78 = vector.load %arg3[%c7_70, %c0_71] : memref<9x16xf32, #tpu.memory_space<vmem>>, vector<1x16xf32>
    %79 = vector.shape_cast %78 : vector<1x16xf32> to vector<16xf32>
    %80 = vector.shape_cast %79 : vector<16xf32> to vector<1x1x1x16xf32>
    %81 = vector.broadcast %80 : vector<1x1x1x16xf32> to vector<2x8x8x16xf32>
    %82 = arith.mulf %77, %81 : vector<2x8x8x16xf32>
    %83 = arith.addf %76, %82 : vector<2x8x8x16xf32>
    %c0_72 = arith.constant 0 : index
    %c0_73 = arith.constant 0 : index
    %c2_74 = arith.constant 2 : index
    %c0_75 = arith.constant 0 : index
    %84 = vector.load %arg6[%c0_72, %c0_73, %c2_74, %c0_75] : memref<2x10x10x16xf32, #tpu.memory_space<vmem>>, vector<2x10x8x16xf32>
    %85 = vector.extract_strided_slice %84 {offsets = [0, 0, 0, 0], sizes = [2, 8, 8, 16], strides = [1, 1, 1, 1]} : vector<2x10x8x16xf32> to vector<2x8x8x16xf32>
    %c2_76 = arith.constant 2 : index
    %c0_77 = arith.constant 0 : index
    %86 = vector.load %arg3[%c2_76, %c0_77] : memref<9x16xf32, #tpu.memory_space<vmem>>, vector<1x16xf32>
    %87 = vector.shape_cast %86 : vector<1x16xf32> to vector<16xf32>
    %88 = vector.shape_cast %87 : vector<16xf32> to vector<1x1x1x16xf32>
    %89 = vector.broadcast %88 : vector<1x1x1x16xf32> to vector<2x8x8x16xf32>
    %90 = arith.mulf %85, %89 : vector<2x8x8x16xf32>
    %91 = arith.addf %83, %90 : vector<2x8x8x16xf32>
    %92 = vector.extract_strided_slice %84 {offsets = [0, 1, 0, 0], sizes = [2, 8, 8, 16], strides = [1, 1, 1, 1]} : vector<2x10x8x16xf32> to vector<2x8x8x16xf32>
    %c5_78 = arith.constant 5 : index
    %c0_79 = arith.constant 0 : index
    %93 = vector.load %arg3[%c5_78, %c0_79] : memref<9x16xf32, #tpu.memory_space<vmem>>, vector<1x16xf32>
    %94 = vector.shape_cast %93 : vector<1x16xf32> to vector<16xf32>
    %95 = vector.shape_cast %94 : vector<16xf32> to vector<1x1x1x16xf32>
    %96 = vector.broadcast %95 : vector<1x1x1x16xf32> to vector<2x8x8x16xf32>
    %97 = arith.mulf %92, %96 : vector<2x8x8x16xf32>
    %98 = arith.addf %91, %97 : vector<2x8x8x16xf32>
    %99 = vector.extract_strided_slice %84 {offsets = [0, 2, 0, 0], sizes = [2, 8, 8, 16], strides = [1, 1, 1, 1]} : vector<2x10x8x16xf32> to vector<2x8x8x16xf32>
    %c8_80 = arith.constant 8 : index
    %c0_81 = arith.constant 0 : index
    %100 = vector.load %arg3[%c8_80, %c0_81] : memref<9x16xf32, #tpu.memory_space<vmem>>, vector<1x16xf32>
    %101 = vector.shape_cast %100 : vector<1x16xf32> to vector<16xf32>
    %102 = vector.shape_cast %101 : vector<16xf32> to vector<1x1x1x16xf32>
    %103 = vector.broadcast %102 : vector<1x1x1x16xf32> to vector<2x8x8x16xf32>
    %104 = arith.mulf %99, %103 : vector<2x8x8x16xf32>
    %105 = arith.addf %98, %104 : vector<2x8x8x16xf32>
    %106 = vector.extract_strided_slice %105 {offsets = [0, 0, 0, 0], sizes = [2, 1, 8, 16], strides = [1, 1, 1, 1]} : vector<2x8x8x16xf32> to vector<2x1x8x16xf32>
    %107 = vector.shape_cast %106 : vector<2x1x8x16xf32> to vector<2x8x16xf32>
    %c0_82 = arith.constant 0 : index
    %c1_83 = arith.constant 1 : index
    %c0_84 = arith.constant 0 : index
    %108 = vector.load %arg5[%c0_82, %c1_83, %c0_84] : memref<2x65x16xf32, #tpu.memory_space<vmem>>, vector<2x8x16xf32>
    tpu.vector_store %arg5[%c0_82, %c1_83, %c0_84], %107 {strides = array<i32>} : memref<2x65x16xf32, #tpu.memory_space<vmem>>, vector<2x8x16xf32>,
    %109 = vector.extract_strided_slice %105 {offsets = [0, 1, 0, 0], sizes = [2, 1, 8, 16], strides = [1, 1, 1, 1]} : vector<2x8x8x16xf32> to vector<2x1x8x16xf32>
    %110 = vector.shape_cast %109 : vector<2x1x8x16xf32> to vector<2x8x16xf32>
    %c0_85 = arith.constant 0 : index
    %c9_86 = arith.constant 9 : index
    %c0_87 = arith.constant 0 : index
    %111 = vector.load %arg5[%c0_85, %c9_86, %c0_87] : memref<2x65x16xf32, #tpu.memory_space<vmem>>, vector<2x8x16xf32>
    tpu.vector_store %arg5[%c0_85, %c9_86, %c0_87], %110 {strides = array<i32>} : memref<2x65x16xf32, #tpu.memory_space<vmem>>, vector<2x8x16xf32>,
    %112 = vector.extract_strided_slice %105 {offsets = [0, 2, 0, 0], sizes = [2, 1, 8, 16], strides = [1, 1, 1, 1]} : vector<2x8x8x16xf32> to vector<2x1x8x16xf32>
    %113 = vector.shape_cast %112 : vector<2x1x8x16xf32> to vector<2x8x16xf32>
    %c0_88 = arith.constant 0 : index
    %c17_89 = arith.constant 17 : index
    %c0_90 = arith.constant 0 : index
    %114 = vector.load %arg5[%c0_88, %c17_89, %c0_90] : memref<2x65x16xf32, #tpu.memory_space<vmem>>, vector<2x8x16xf32>
    tpu.vector_store %arg5[%c0_88, %c17_89, %c0_90], %113 {strides = array<i32>} : memref<2x65x16xf32, #tpu.memory_space<vmem>>, vector<2x8x16xf32>,
    %115 = vector.extract_strided_slice %105 {offsets = [0, 3, 0, 0], sizes = [2, 1, 8, 16], strides = [1, 1, 1, 1]} : vector<2x8x8x16xf32> to vector<2x1x8x16xf32>
    %116 = vector.shape_cast %115 : vector<2x1x8x16xf32> to vector<2x8x16xf32>
    %c0_91 = arith.constant 0 : index
    %c25_92 = arith.constant 25 : index
    %c0_93 = arith.constant 0 : index
    %117 = vector.load %arg5[%c0_91, %c25_92, %c0_93] : memref<2x65x16xf32, #tpu.memory_space<vmem>>, vector<2x8x16xf32>
    tpu.vector_store %arg5[%c0_91, %c25_92, %c0_93], %116 {strides = array<i32>} : memref<2x65x16xf32, #tpu.memory_space<vmem>>, vector<2x8x16xf32>,
    %118 = vector.extract_strided_slice %105 {offsets = [0, 4, 0, 0], sizes = [2, 1, 8, 16], strides = [1, 1, 1, 1]} : vector<2x8x8x16xf32> to vector<2x1x8x16xf32>
    %119 = vector.shape_cast %118 : vector<2x1x8x16xf32> to vector<2x8x16xf32>
    %c0_94 = arith.constant 0 : index
    %c33_95 = arith.constant 33 : index
    %c0_96 = arith.constant 0 : index
    %120 = vector.load %arg5[%c0_94, %c33_95, %c0_96] : memref<2x65x16xf32, #tpu.memory_space<vmem>>, vector<2x8x16xf32>
    tpu.vector_store %arg5[%c0_94, %c33_95, %c0_96], %119 {strides = array<i32>} : memref<2x65x16xf32, #tpu.memory_space<vmem>>, vector<2x8x16xf32>,
    %121 = vector.extract_strided_slice %105 {offsets = [0, 5, 0, 0], sizes = [2, 1, 8, 16], strides = [1, 1, 1, 1]} : vector<2x8x8x16xf32> to vector<2x1x8x16xf32>
    %122 = vector.shape_cast %121 : vector<2x1x8x16xf32> to vector<2x8x16xf32>
    %c0_97 = arith.constant 0 : index
    %c41_98 = arith.constant 41 : index
    %c0_99 = arith.constant 0 : index
    %123 = vector.load %arg5[%c0_97, %c41_98, %c0_99] : memref<2x65x16xf32, #tpu.memory_space<vmem>>, vector<2x8x16xf32>
    tpu.vector_store %arg5[%c0_97, %c41_98, %c0_99], %122 {strides = array<i32>} : memref<2x65x16xf32, #tpu.memory_space<vmem>>, vector<2x8x16xf32>,
    %124 = vector.extract_strided_slice %105 {offsets = [0, 6, 0, 0], sizes = [2, 1, 8, 16], strides = [1, 1, 1, 1]} : vector<2x8x8x16xf32> to vector<2x1x8x16xf32>
    %125 = vector.shape_cast %124 : vector<2x1x8x16xf32> to vector<2x8x16xf32>
    %c0_100 = arith.constant 0 : index
    %c49_101 = arith.constant 49 : index
    %c0_102 = arith.constant 0 : index
    %126 = vector.load %arg5[%c0_100, %c49_101, %c0_102] : memref<2x65x16xf32, #tpu.memory_space<vmem>>, vector<2x8x16xf32>
    tpu.vector_store %arg5[%c0_100, %c49_101, %c0_102], %125 {strides = array<i32>} : memref<2x65x16xf32, #tpu.memory_space<vmem>>, vector<2x8x16xf32>,
    %127 = vector.extract_strided_slice %105 {offsets = [0, 7, 0, 0], sizes = [2, 1, 8, 16], strides = [1, 1, 1, 1]} : vector<2x8x8x16xf32> to vector<2x1x8x16xf32>
    %128 = vector.shape_cast %127 : vector<2x1x8x16xf32> to vector<2x8x16xf32>
    %c0_103 = arith.constant 0 : index
    %c57_104 = arith.constant 57 : index
    %c0_105 = arith.constant 0 : index
    %129 = vector.load %arg5[%c0_103, %c57_104, %c0_105] : memref<2x65x16xf32, #tpu.memory_space<vmem>>, vector<2x8x16xf32>
    tpu.vector_store %arg5[%c0_103, %c57_104, %c0_105], %128 {strides = array<i32>} : memref<2x65x16xf32, #tpu.memory_space<vmem>>, vector<2x8x16xf32>,
    return
  }
  func.func @transform_0(%arg0: i32, %arg1: i32) -> (i32, i32, i32) {
    %c0_i32 = arith.constant 0 : i32
    %c0_i32_0 = arith.constant 0 : i32
    return %arg0, %c0_i32, %arg1 : i32, i32, i32
  }
  func.func @transform_1(%arg0: i32, %arg1: i32) -> (i32, i32) {
    %c0_i32 = arith.constant 0 : i32
    %c0_i32_0 = arith.constant 0 : i32
    return %c0_i32, %arg1 : i32, i32
  }
  func.func @transform_2(%arg0: i32, %arg1: i32) -> (i32, i32) {
    %c0_i32 = arith.constant 0 : i32
    %c0_i32_0 = arith.constant 0 : i32
    return %c0_i32, %arg1 : i32, i32
  }
  func.func @transform_3(%arg0: i32, %arg1: i32) -> (i32, i32, i32) {
    %c0_i32 = arith.constant 0 : i32
    %c0_i32_0 = arith.constant 0 : i32
    return %arg0, %c0_i32, %arg1 : i32, i32, i32
  }
}

</mosaic_0001>

<llo_original>
// kernel: dwconv_forward.1
$region0: #{dwconv_forward.1}
  #allocation0 [shape = 'u32[]', space=smem, size = 0x4, offset = 0x4, fixed_abs, tag = 'smem constant byte address 0x4 - core index']
  #allocation1 [shape = 'u32[144,128]{1,0:T(1,128)}', space=vmem, size = 0x12000, scoped, tag = 'internal scratch']
  #allocation2 [shape = 'f32[2,10,10,16]{3,2,1,0:T(8,128)}', space=vmem, size = 0x28000, scoped, tag = 'scratch operand']
  %s0 = inlined_call_operand.vmem [shape: f32[2,65,16], index: 0, kind: input, shape index: {}]
  %s1 = inlined_call_operand.vmem [shape: f32[9,16], index: 1, kind: input, shape index: {}]
  %s2 = inlined_call_operand.vmem [shape: f32[1,16], index: 2, kind: input, shape index: {}]
  %s3 = inlined_call_operand.vmem [shape: f32[2,65,16], index: 3, kind: output, shape index: {}]
  %s4 = sld [smem:[#allocation0]]
  $region22: #{dwconv_forward.1} parent=0
    _
  %s6 = ssub.s32 1, %s4
  %s7 = scalar_select 0, %s6, %s4
  // Predicated region
  $region2: #{dwconv_forward.1} parent=0 // pred_check
    _
  $region3: #{dwconv_forward.1} parent=0 // pred_check_branch
    %9 = sbr.rel (0) target = $region5
  $region4: #{dwconv_forward.1} parent=0 // pred_region
    _
  $region5: #{dwconv_forward.1} parent=0 // pred_fallthru
    _
  // Predicated region
  $region6: #{dwconv_forward.1} parent=0 // pred_check
    _
  $region7: #{dwconv_forward.1} parent=0 // pred_check_branch
    %11 = sbr.rel (0) target = $region9
  $region8: #{dwconv_forward.1} parent=0 // pred_region
    _
  $region9: #{dwconv_forward.1} parent=0 // pred_fallthru
    _
  // Predicated region
  $region10: #{dwconv_forward.1} parent=0 // pred_check
    _
  $region11: #{dwconv_forward.1} parent=0 // pred_check_branch
    %13 = sbr.rel (0) target = $region13
  $region12: #{dwconv_forward.1} parent=0 // pred_region
    _
  $region13: #{dwconv_forward.1} parent=0 // pred_fallthru
    _
  %v14 = vld [vmem:[%s0] sm:$0x1]
  %v15 = vld [vmem:[%s0 + $0x48] sm:$0x1]
  %vm16 = vcmask 122880
  %17 = vst.msk [vmem:[%s3] sm:$0x1] %vm16, %v14
  %18 = vst.msk [vmem:[%s3 + $0x48] sm:$0x1] %vm16, %v15
  %vm19 = vcmask 130048
  %20 = vst.msk [vmem:[#allocation2] sm:$0xff] %vm19, 0.0
  %vm21 = vcmask 123904
  %22 = vst.msk [vmem:[#allocation2 + $0x8] sm:$0x3] %vm21, 0.0
  %23 = vst.msk [vmem:[#allocation2 + $0x10] sm:$0xff] %vm19, 0.0
  %24 = vst.msk [vmem:[#allocation2 + $0x18] sm:$0x3] %vm21, 0.0
  %25 = vst.msk [vmem:[#allocation2 + $0x20] sm:$0xff] %vm19, 0.0
  %26 = vst.msk [vmem:[#allocation2 + $0x28] sm:$0x3] %vm21, 0.0
  %27 = vst.msk [vmem:[#allocation2 + $0x30] sm:$0xff] %vm19, 0.0
  %28 = vst.msk [vmem:[#allocation2 + $0x38] sm:$0x3] %vm21, 0.0
  %29 = vst.msk [vmem:[#allocation2 + $0x40] sm:$0xff] %vm19, 0.0
  %30 = vst.msk [vmem:[#allocation2 + $0x48] sm:$0x3] %vm21, 0.0
  %31 = vst.msk [vmem:[#allocation2 + $0x50] sm:$0xff] %vm19, 0.0
  %32 = vst.msk [vmem:[#allocation2 + $0x58] sm:$0x3] %vm21, 0.0
  %33 = vst.msk [vmem:[#allocation2 + $0x60] sm:$0xff] %vm19, 0.0
  %34 = vst.msk [vmem:[#allocation2 + $0x68] sm:$0x3] %vm21, 0.0
  %35 = vst.msk [vmem:[#allocation2 + $0x70] sm:$0xff] %vm19, 0.0
  %36 = vst.msk [vmem:[#allocation2 + $0x78] sm:$0x3] %vm21, 0.0
  %37 = vst.msk [vmem:[#allocation2 + $0x80] sm:$0xff] %vm19, 0.0
  %38 = vst.msk [vmem:[#allocation2 + $0x88] sm:$0x3] %vm21, 0.0
  %39 = vst.msk [vmem:[#allocation2 + $0x90] sm:$0xff] %vm19, 0.0
  %40 = vst.msk [vmem:[#allocation2 + $0x98] sm:$0x3] %vm21, 0.0
  %41 = vst.msk [vmem:[#allocation2 + $0xa0] sm:$0xff] %vm19, 0.0
  %42 = vst.msk [vmem:[#allocation2 + $0xa8] sm:$0x3] %vm21, 0.0
  %43 = vst.msk [vmem:[#allocation2 + $0xb0] sm:$0xff] %vm19, 0.0
  %44 = vst.msk [vmem:[#allocation2 + $0xb8] sm:$0x3] %vm21, 0.0
  %45 = vst.msk [vmem:[#allocation2 + $0xc0] sm:$0xff] %vm19, 0.0
  %46 = vst.msk [vmem:[#allocation2 + $0xc8] sm:$0x3] %vm21, 0.0
  %47 = vst.msk [vmem:[#allocation2 + $0xd0] sm:$0xff] %vm19, 0.0
  %48 = vst.msk [vmem:[#allocation2 + $0xd8] sm:$0x3] %vm21, 0.0
  %49 = vst.msk [vmem:[#allocation2 + $0xe0] sm:$0xff] %vm19, 0.0
  %50 = vst.msk [vmem:[#allocation2 + $0xe8] sm:$0x3] %vm21, 0.0
  %51 = vst.msk [vmem:[#allocation2 + $0xf0] sm:$0xff] %vm19, 0.0
  %52 = vst.msk [vmem:[#allocation2 + $0xf8] sm:$0x3] %vm21, 0.0
  %53 = vst.msk [vmem:[#allocation2 + $0x100] sm:$0xff] %vm19, 0.0
  %54 = vst.msk [vmem:[#allocation2 + $0x108] sm:$0x3] %vm21, 0.0
  %55 = vst.msk [vmem:[#allocation2 + $0x110] sm:$0xff] %vm19, 0.0
  %56 = vst.msk [vmem:[#allocation2 + $0x118] sm:$0x3] %vm21, 0.0
  %57 = vst.msk [vmem:[#allocation2 + $0x120] sm:$0xff] %vm19, 0.0
  %58 = vst.msk [vmem:[#allocation2 + $0x128] sm:$0x3] %vm21, 0.0
  %59 = vst.msk [vmem:[#allocation2 + $0x130] sm:$0xff] %vm19, 0.0
  %60 = vst.msk [vmem:[#allocation2 + $0x138] sm:$0x3] %vm21, 0.0
  %v61 = vld [vmem:[%s0 + $0x1] sm:$0xff]
  %v62 = vld [vmem:[%s0 + $0x49] sm:$0xff]
  %s63 = scalar_lea.vmem [#allocation2], 16
  %64 = vst.msk [vmem:[%s63 + $0x1] sm:$0xff] %vm19, %v61
  %65 = vst.msk [vmem:[%s63 + $0xa1] sm:$0xff] %vm19, %v62
  %v66 = vld [vmem:[%s0 + $0x9] sm:$0xff]
  %v67 = vld [vmem:[%s0 + $0x51] sm:$0xff]
  %s68 = scalar_lea.vmem [#allocation2], 32
  %69 = vst.msk [vmem:[%s68 + $0x1] sm:$0xff] %vm19, %v66
  %70 = vst.msk [vmem:[%s68 + $0xa1] sm:$0xff] %vm19, %v67
  %v71 = vld [vmem:[%s0 + $0x11] sm:$0xff]
  %v72 = vld [vmem:[%s0 + $0x59] sm:$0xff]
  %s73 = scalar_lea.vmem [#allocation2], 48
  %74 = vst.msk [vmem:[%s73 + $0x1] sm:$0xff] %vm19, %v71
  %75 = vst.msk [vmem:[%s73 + $0xa1] sm:$0xff] %vm19, %v72
  %v76 = vld [vmem:[%s0 + $0x19] sm:$0xff]
  %v77 = vld [vmem:[%s0 + $0x61] sm:$0xff]
  %s78 = scalar_lea.vmem [#allocation2], 64
  %79 = vst.msk [vmem:[%s78 + $0x1] sm:$0xff] %vm19, %v76
  %80 = vst.msk [vmem:[%s78 + $0xa1] sm:$0xff] %vm19, %v77
  %v81 = vld [vmem:[%s0 + $0x21] sm:$0xff]
  %v82 = vld [vmem:[%s0 + $0x69] sm:$0xff]
  %s83 = scalar_lea.vmem [#allocation2], 80
  %84 = vst.msk [vmem:[%s83 + $0x1] sm:$0xff] %vm19, %v81
  %85 = vst.msk [vmem:[%s83 + $0xa1] sm:$0xff] %vm19, %v82
  %v86 = vld [vmem:[%s0 + $0x29] sm:$0xff]
  %v87 = vld [vmem:[%s0 + $0x71] sm:$0xff]
  %s88 = scalar_lea.vmem [#allocation2], 96
  %89 = vst.msk [vmem:[%s88 + $0x1] sm:$0xff] %vm19, %v86
  %90 = vst.msk [vmem:[%s88 + $0xa1] sm:$0xff] %vm19, %v87
  %v91 = vld [vmem:[%s0 + $0x31] sm:$0xff]
  %v92 = vld [vmem:[%s0 + $0x79] sm:$0xff]
  %s93 = scalar_lea.vmem [#allocation2], 112
  %94 = vst.msk [vmem:[%s93 + $0x1] sm:$0xff] %vm19, %v91
  %95 = vst.msk [vmem:[%s93 + $0xa1] sm:$0xff] %vm19, %v92
  %v96 = vld [vmem:[%s0 + $0x39] sm:$0xff]
  %v97 = vld [vmem:[%s0 + $0x81] sm:$0xff]
  %s98 = scalar_lea.vmem [#allocation2], 128
  %99 = vst.msk [vmem:[%s98 + $0x1] sm:$0xff] %vm19, %v96
  %100 = vst.msk [vmem:[%s98 + $0xa1] sm:$0xff] %vm19, %v97
  %v101 = vld [vmem:[%s2] sm:$0x1]
  %v103 = vlaneseq
  %v104 = vshrl.u32 %v103, 7
  %v105 = vsub.s32 0, %v104
  %v106 = vrot.slane %v101, %v105
  %v108 = vld [vmem:[#allocation2] sm:$0xff]
  %v109 = vld [vmem:[#allocation2 + $0x10] sm:$0xff]
  %v110 = vld [vmem:[#allocation2 + $0x20] sm:$0xff]
  %v111 = vld [vmem:[#allocation2 + $0x30] sm:$0xff]
  %v112 = vld [vmem:[#allocation2 + $0x40] sm:$0xff]
  %v113 = vld [vmem:[#allocation2 + $0x50] sm:$0xff]
  %v114 = vld [vmem:[#allocation2 + $0x60] sm:$0xff]
  %v115 = vld [vmem:[#allocation2 + $0x70] sm:$0xff]
  %v116 = vld [vmem:[#allocation2 + $0x80] sm:$0xff]
  %v117 = vld [vmem:[#allocation2 + $0x90] sm:$0xff]
  %v118 = vld [vmem:[#allocation2 + $0xa0] sm:$0xff]
  %v119 = vld [vmem:[#allocation2 + $0xb0] sm:$0xff]
  %v120 = vld [vmem:[#allocation2 + $0xc0] sm:$0xff]
  %v121 = vld [vmem:[#allocation2 + $0xd0] sm:$0xff]
  %v122 = vld [vmem:[#allocation2 + $0xe0] sm:$0xff]
  %v123 = vld [vmem:[#allocation2 + $0xf0] sm:$0xff]
  %v124 = vld [vmem:[#allocation2 + $0x100] sm:$0xff]
  %v125 = vld [vmem:[#allocation2 + $0x110] sm:$0xff]
  %v126 = vld [vmem:[#allocation2 + $0x120] sm:$0xff]
  %v127 = vld [vmem:[#allocation2 + $0x130] sm:$0xff]
  %v128 = vld [vmem:[%s1] sm:$0x1]
  %v129 = vlaneseq
  %v130 = vshrl.u32 %v129, 7
  %v131 = vsub.s32 0, %v130
  %v132 = vrot.slane %v128, %v131
  %v133 = vmul.f32 %v108, %v132
  %v134 = vmul.f32 %v109, %v132
  %v135 = vmul.f32 %v110, %v132
  %v136 = vmul.f32 %v111, %v132
  %v137 = vmul.f32 %v112, %v132
  %v138 = vmul.f32 %v113, %v132
  %v139 = vmul.f32 %v114, %v132
  %v140 = vmul.f32 %v115, %v132
  %v141 = vmul.f32 %v118, %v132
  %v142 = vmul.f32 %v119, %v132
  %v143 = vmul.f32 %v120, %v132
  %v144 = vmul.f32 %v121, %v132
  %v145 = vmul.f32 %v122, %v132
  %v146 = vmul.f32 %v123, %v132
  %v147 = vmul.f32 %v124, %v132
  %v148 = vmul.f32 %v125, %v132
  %v149 = vadd.f32 %v106, %v133
  %v150 = vadd.f32 %v106, %v134
  %v151 = vadd.f32 %v106, %v135
  %v152 = vadd.f32 %v106, %v136
  %v153 = vadd.f32 %v106, %v137
  %v154 = vadd.f32 %v106, %v138
  %v155 = vadd.f32 %v106, %v139
  %v156 = vadd.f32 %v106, %v140
  %v157 = vadd.f32 %v106, %v141
  %v158 = vadd.f32 %v106, %v142
  %v159 = vadd.f32 %v106, %v143
  %v160 = vadd.f32 %v106, %v144
  %v161 = vadd.f32 %v106, %v145
  %v162 = vadd.f32 %v106, %v146
  %v163 = vadd.f32 %v106, %v147
  %v164 = vadd.f32 %v106, %v148
  %v165 = vld [vmem:[%s1 + $0x3] sm:$0x1]
  %v166 = vlaneseq
  %v167 = vshrl.u32 %v166, 7
  %v168 = vsub.s32 0, %v167
  %v169 = vrot.slane %v165, %v168
  %v170 = vmul.f32 %v109, %v169
  %v171 = vmul.f32 %v110, %v169
  %v172 = vmul.f32 %v111, %v169
  %v173 = vmul.f32 %v112, %v169
  %v174 = vmul.f32 %v113, %v169
  %v175 = vmul.f32 %v114, %v169
  %v176 = vmul.f32 %v115, %v169
  %v177 = vmul.f32 %v116, %v169
  %v178 = vmul.f32 %v119, %v169
  %v179 = vmul.f32 %v120, %v169
  %v180 = vmul.f32 %v121, %v169
  %v181 = vmul.f32 %v122, %v169
  %v182 = vmul.f32 %v123, %v169
  %v183 = vmul.f32 %v124, %v169
  %v184 = vmul.f32 %v125, %v169
  %v185 = vmul.f32 %v126, %v169
  %v186 = vadd.f32 %v149, %v170
  %v187 = vadd.f32 %v150, %v171
  %v188 = vadd.f32 %v151, %v172
  %v189 = vadd.f32 %v152, %v173
  %v190 = vadd.f32 %v153, %v174
  %v191 = vadd.f32 %v154, %v175
  %v192 = vadd.f32 %v155, %v176
  %v193 = vadd.f32 %v156, %v177
  %v194 = vadd.f32 %v157, %v178
  %v195 = vadd.f32 %v158, %v179
  %v196 = vadd.f32 %v159, %v180
  %v197 = vadd.f32 %v160, %v181
  %v198 = vadd.f32 %v161, %v182
  %v199 = vadd.f32 %v162, %v183
  %v200 = vadd.f32 %v163, %v184
  %v201 = vadd.f32 %v164, %v185
  %v202 = vld [vmem:[%s1 + $0x6] sm:$0x1]
  %v203 = vlaneseq
  %v204 = vshrl.u32 %v203, 7
  %v205 = vsub.s32 0, %v204
  %v206 = vrot.slane %v202, %v205
  %v207 = vmul.f32 %v110, %v206
  %v208 = vmul.f32 %v111, %v206
  %v209 = vmul.f32 %v112, %v206
  %v210 = vmul.f32 %v113, %v206
  %v211 = vmul.f32 %v114, %v206
  %v212 = vmul.f32 %v115, %v206
  %v213 = vmul.f32 %v116, %v206
  %v214 = vmul.f32 %v117, %v206
  %v215 = vmul.f32 %v120, %v206
  %v216 = vmul.f32 %v121, %v206
  %v217 = vmul.f32 %v122, %v206
  %v218 = vmul.f32 %v123, %v206
  %v219 = vmul.f32 %v124, %v206
  %v220 = vmul.f32 %v125, %v206
  %v221 = vmul.f32 %v126, %v206
  %v222 = vmul.f32 %v127, %v206
  %v223 = vadd.f32 %v186, %v207
  %v224 = vadd.f32 %v187, %v208
  %v225 = vadd.f32 %v188, %v209
  %v226 = vadd.f32 %v189, %v210
  %v227 = vadd.f32 %v190, %v211
  %v228 = vadd.f32 %v191, %v212
  %v229 = vadd.f32 %v192, %v213
  %v230 = vadd.f32 %v193, %v214
  %v231 = vadd.f32 %v194, %v215
  %v232 = vadd.f32 %v195, %v216
  %v233 = vadd.f32 %v196, %v217
  %v234 = vadd.f32 %v197, %v218
  %v235 = vadd.f32 %v198, %v219
  %v236 = vadd.f32 %v199, %v220
  %v237 = vadd.f32 %v200, %v221
  %v238 = vadd.f32 %v201, %v222
  %v239 = vld [vmem:[#allocation2 + $0x1] sm:$0xff]
  %v240 = vld [vmem:[#allocation2 + $0x11] sm:$0xff]
  %v241 = vld [vmem:[#allocation2 + $0x21] sm:$0xff]
  %v242 = vld [vmem:[#allocation2 + $0x31] sm:$0xff]
  %v243 = vld [vmem:[#allocation2 + $0x41] sm:$0xff]
  %v244 = vld [vmem:[#allocation2 + $0x51] sm:$0xff]
  %v245 = vld [vmem:[#allocation2 + $0x61] sm:$0xff]
  %v246 = vld [vmem:[#allocation2 + $0x71] sm:$0xff]
  %v247 = vld [vmem:[#allocation2 + $0x81] sm:$0xff]
  %v248 = vld [vmem:[#allocation2 + $0x91] sm:$0xff]
  %v249 = vld [vmem:[#allocation2 + $0xa1] sm:$0xff]
  %v250 = vld [vmem:[#allocation2 + $0xb1] sm:$0xff]
  %v251 = vld [vmem:[#allocation2 + $0xc1] sm:$0xff]
  %v252 = vld [vmem:[#allocation2 + $0xd1] sm:$0xff]
  %v253 = vld [vmem:[#allocation2 + $0xe1] sm:$0xff]
  %v254 = vld [vmem:[#allocation2 + $0xf1] sm:$0xff]
  %v255 = vld [vmem:[#allocation2 + $0x101] sm:$0xff]
  %v256 = vld [vmem:[#allocation2 + $0x111] sm:$0xff]
  %v257 = vld [vmem:[#allocation2 + $0x121] sm:$0xff]
  %v258 = vld [vmem:[#allocation2 + $0x131] sm:$0xff]
  %v259 = vld [vmem:[%s1 + $0x1] sm:$0x1]
  %v260 = vlaneseq
  %v261 = vshrl.u32 %v260, 7
  %v262 = vsub.s32 0, %v261
  %v263 = vrot.slane %v259, %v262
  %v264 = vmul.f32 %v239, %v263
  %v265 = vmul.f32 %v240, %v263
  %v266 = vmul.f32 %v241, %v263
  %v267 = vmul.f32 %v242, %v263
  %v268 = vmul.f32 %v243, %v263
  %v269 = vmul.f32 %v244, %v263
  %v270 = vmul.f32 %v245, %v263
  %v271 = vmul.f32 %v246, %v263
  %v272 = vmul.f32 %v249, %v263
  %v273 = vmul.f32 %v250, %v263
  %v274 = vmul.f32 %v251, %v263
  %v275 = vmul.f32 %v252, %v263
  %v276 = vmul.f32 %v253, %v263
  %v277 = vmul.f32 %v254, %v263
  %v278 = vmul.f32 %v255, %v263
  %v279 = vmul.f32 %v256, %v263
  %v280 = vadd.f32 %v223, %v264
  %v281 = vadd.f32 %v224, %v265
  %v282 = vadd.f32 %v225, %v266
  %v283 = vadd.f32 %v226, %v267
  %v284 = vadd.f32 %v227, %v268
  %v285 = vadd.f32 %v228, %v269
  %v286 = vadd.f32 %v229, %v270
  %v287 = vadd.f32 %v230, %v271
  %v288 = vadd.f32 %v231, %v272
  %v289 = vadd.f32 %v232, %v273
  %v290 = vadd.f32 %v233, %v274
  %v291 = vadd.f32 %v234, %v275
  %v292 = vadd.f32 %v235, %v276
  %v293 = vadd.f32 %v236, %v277
  %v294 = vadd.f32 %v237, %v278
  %v295 = vadd.f32 %v238, %v279
  %v296 = vld [vmem:[%s1 + $0x4] sm:$0x1]
  %v297 = vlaneseq
  %v298 = vshrl.u32 %v297, 7
  %v299 = vsub.s32 0, %v298
  %v300 = vrot.slane %v296, %v299
  %v301 = vmul.f32 %v240, %v300
  %v302 = vmul.f32 %v241, %v300
  %v303 = vmul.f32 %v242, %v300
  %v304 = vmul.f32 %v243, %v300
  %v305 = vmul.f32 %v244, %v300
  %v306 = vmul.f32 %v245, %v300
  %v307 = vmul.f32 %v246, %v300
  %v308 = vmul.f32 %v247, %v300
  %v309 = vmul.f32 %v250, %v300
  %v310 = vmul.f32 %v251, %v300
  %v311 = vmul.f32 %v252, %v300
  %v312 = vmul.f32 %v253, %v300
  %v313 = vmul.f32 %v254, %v300
  %v314 = vmul.f32 %v255, %v300
  %v315 = vmul.f32 %v256, %v300
  %v316 = vmul.f32 %v257, %v300
  %v317 = vadd.f32 %v280, %v301
  %v318 = vadd.f32 %v281, %v302
  %v319 = vadd.f32 %v282, %v303
  %v320 = vadd.f32 %v283, %v304
  %v321 = vadd.f32 %v284, %v305
  %v322 = vadd.f32 %v285, %v306
  %v323 = vadd.f32 %v286, %v307
  %v324 = vadd.f32 %v287, %v308
  %v325 = vadd.f32 %v288, %v309
  %v326 = vadd.f32 %v289, %v310
  %v327 = vadd.f32 %v290, %v311
  %v328 = vadd.f32 %v291, %v312
  %v329 = vadd.f32 %v292, %v313
  %v330 = vadd.f32 %v293, %v314
  %v331 = vadd.f32 %v294, %v315
  %v332 = vadd.f32 %v295, %v316
  %v333 = vld [vmem:[%s1 + $0x7] sm:$0x1]
  %v334 = vlaneseq
  %v335 = vshrl.u32 %v334, 7
  %v336 = vsub.s32 0, %v335
  %v337 = vrot.slane %v333, %v336
  %v338 = vmul.f32 %v241, %v337
  %v339 = vmul.f32 %v242, %v337
  %v340 = vmul.f32 %v243, %v337
  %v341 = vmul.f32 %v244, %v337
  %v342 = vmul.f32 %v245, %v337
  %v343 = vmul.f32 %v246, %v337
  %v344 = vmul.f32 %v247, %v337
  %v345 = vmul.f32 %v248, %v337
  %v346 = vmul.f32 %v251, %v337
  %v347 = vmul.f32 %v252, %v337
  %v348 = vmul.f32 %v253, %v337
  %v349 = vmul.f32 %v254, %v337
  %v350 = vmul.f32 %v255, %v337
  %v351 = vmul.f32 %v256, %v337
  %v352 = vmul.f32 %v257, %v337
  %v353 = vmul.f32 %v258, %v337
  %v354 = vadd.f32 %v317, %v338
  %v355 = vadd.f32 %v318, %v339
  %v356 = vadd.f32 %v319, %v340
  %v357 = vadd.f32 %v320, %v341
  %v358 = vadd.f32 %v321, %v342
  %v359 = vadd.f32 %v322, %v343
  %v360 = vadd.f32 %v323, %v344
  %v361 = vadd.f32 %v324, %v345
  %v362 = vadd.f32 %v325, %v346
  %v363 = vadd.f32 %v326, %v347
  %v364 = vadd.f32 %v327, %v348
  %v365 = vadd.f32 %v328, %v349
  %v366 = vadd.f32 %v329, %v350
  %v367 = vadd.f32 %v330, %v351
  %v368 = vadd.f32 %v331, %v352
  %v369 = vadd.f32 %v332, %v353
  %v370 = vld [vmem:[#allocation2 + $0x2] sm:$0xff]
  %v371 = vld [vmem:[#allocation2 + $0x12] sm:$0xff]
  %v372 = vld [vmem:[#allocation2 + $0x22] sm:$0xff]
  %v373 = vld [vmem:[#allocation2 + $0x32] sm:$0xff]
  %v374 = vld [vmem:[#allocation2 + $0x42] sm:$0xff]
  %v375 = vld [vmem:[#allocation2 + $0x52] sm:$0xff]
  %v376 = vld [vmem:[#allocation2 + $0x62] sm:$0xff]
  %v377 = vld [vmem:[#allocation2 + $0x72] sm:$0xff]
  %v378 = vld [vmem:[#allocation2 + $0x82] sm:$0xff]
  %v379 = vld [vmem:[#allocation2 + $0x92] sm:$0xff]
  %v380 = vld [vmem:[#allocation2 + $0xa2] sm:$0xff]
  %v381 = vld [vmem:[#allocation2 + $0xb2] sm:$0xff]
  %v382 = vld [vmem:[#allocation2 + $0xc2] sm:$0xff]
  %v383 = vld [vmem:[#allocation2 + $0xd2] sm:$0xff]
  %v384 = vld [vmem:[#allocation2 + $0xe2] sm:$0xff]
  %v385 = vld [vmem:[#allocation2 + $0xf2] sm:$0xff]
  %v386 = vld [vmem:[#allocation2 + $0x102] sm:$0xff]
  %v387 = vld [vmem:[#allocation2 + $0x112] sm:$0xff]
  %v388 = vld [vmem:[#allocation2 + $0x122] sm:$0xff]
  %v389 = vld [vmem:[#allocation2 + $0x132] sm:$0xff]
  %v390 = vld [vmem:[%s1 + $0x2] sm:$0x1]
  %v391 = vlaneseq
  %v392 = vshrl.u32 %v391, 7
  %v393 = vsub.s32 0, %v392
  %v394 = vrot.slane %v390, %v393
  %v395 = vmul.f32 %v370, %v394
  %v396 = vmul.f32 %v371, %v394
  %v397 = vmul.f32 %v372, %v394
  %v398 = vmul.f32 %v373, %v394
  %v399 = vmul.f32 %v374, %v394
  %v400 = vmul.f32 %v375, %v394
  %v401 = vmul.f32 %v376, %v394
  %v402 = vmul.f32 %v377, %v394
  %v403 = vmul.f32 %v380, %v394
  %v404 = vmul.f32 %v381, %v394
  %v405 = vmul.f32 %v382, %v394
  %v406 = vmul.f32 %v383, %v394
  %v407 = vmul.f32 %v384, %v394
  %v408 = vmul.f32 %v385, %v394
  %v409 = vmul.f32 %v386, %v394
  %v410 = vmul.f32 %v387, %v394
  %v411 = vadd.f32 %v354, %v395
  %v412 = vadd.f32 %v355, %v396
  %v413 = vadd.f32 %v356, %v397
  %v414 = vadd.f32 %v357, %v398
  %v415 = vadd.f32 %v358, %v399
  %v416 = vadd.f32 %v359, %v400
  %v417 = vadd.f32 %v360, %v401
  %v418 = vadd.f32 %v361, %v402
  %v419 = vadd.f32 %v362, %v403
  %v420 = vadd.f32 %v363, %v404
  %v421 = vadd.f32 %v364, %v405
  %v422 = vadd.f32 %v365, %v406
  %v423 = vadd.f32 %v366, %v407
  %v424 = vadd.f32 %v367, %v408
  %v425 = vadd.f32 %v368, %v409
  %v426 = vadd.f32 %v369, %v410
  %v427 = vld [vmem:[%s1 + $0x5] sm:$0x1]
  %v428 = vlaneseq
  %v429 = vshrl.u32 %v428, 7
  %v430 = vsub.s32 0, %v429
  %v431 = vrot.slane %v427, %v430
  %v432 = vmul.f32 %v371, %v431
  %v433 = vmul.f32 %v372, %v431
  %v434 = vmul.f32 %v373, %v431
  %v435 = vmul.f32 %v374, %v431
  %v436 = vmul.f32 %v375, %v431
  %v437 = vmul.f32 %v376, %v431
  %v438 = vmul.f32 %v377, %v431
  %v439 = vmul.f32 %v378, %v431
  %v440 = vmul.f32 %v381, %v431
  %v441 = vmul.f32 %v382, %v431
  %v442 = vmul.f32 %v383, %v431
  %v443 = vmul.f32 %v384, %v431
  %v444 = vmul.f32 %v385, %v431
  %v445 = vmul.f32 %v386, %v431
  %v446 = vmul.f32 %v387, %v431
  %v447 = vmul.f32 %v388, %v431
  %v448 = vadd.f32 %v411, %v432
  %v449 = vadd.f32 %v412, %v433
  %v450 = vadd.f32 %v413, %v434
  %v451 = vadd.f32 %v414, %v435
  %v452 = vadd.f32 %v415, %v436
  %v453 = vadd.f32 %v416, %v437
  %v454 = vadd.f32 %v417, %v438
  %v455 = vadd.f32 %v418, %v439
  %v456 = vadd.f32 %v419, %v440
  %v457 = vadd.f32 %v420, %v441
  %v458 = vadd.f32 %v421, %v442
  %v459 = vadd.f32 %v422, %v443
  %v460 = vadd.f32 %v423, %v444
  %v461 = vadd.f32 %v424, %v445
  %v462 = vadd.f32 %v425, %v446
  %v463 = vadd.f32 %v426, %v447
  %v464 = vld [vmem:[%s1 + $0x8] sm:$0x1]
  %v465 = vlaneseq
  %v466 = vshrl.u32 %v465, 7
  %v467 = vsub.s32 0, %v466
  %v468 = vrot.slane %v464, %v467
  %v469 = vmul.f32 %v372, %v468
  %v470 = vmul.f32 %v373, %v468
  %v471 = vmul.f32 %v374, %v468
  %v472 = vmul.f32 %v375, %v468
  %v473 = vmul.f32 %v376, %v468
  %v474 = vmul.f32 %v377, %v468
  %v475 = vmul.f32 %v378, %v468
  %v476 = vmul.f32 %v379, %v468
  %v477 = vmul.f32 %v382, %v468
  %v478 = vmul.f32 %v383, %v468
  %v479 = vmul.f32 %v384, %v468
  %v480 = vmul.f32 %v385, %v468
  %v481 = vmul.f32 %v386, %v468
  %v482 = vmul.f32 %v387, %v468
  %v483 = vmul.f32 %v388, %v468
  %v484 = vmul.f32 %v389, %v468
  %v485 = vadd.f32 %v448, %v469
  %v486 = vadd.f32 %v449, %v470
  %v487 = vadd.f32 %v450, %v471
  %v488 = vadd.f32 %v451, %v472
  %v489 = vadd.f32 %v452, %v473
  %v490 = vadd.f32 %v453, %v474
  %v491 = vadd.f32 %v454, %v475
  %v492 = vadd.f32 %v455, %v476
  %v493 = vadd.f32 %v456, %v477
  %v494 = vadd.f32 %v457, %v478
  %v495 = vadd.f32 %v458, %v479
  %v496 = vadd.f32 %v459, %v480
  %v497 = vadd.f32 %v460, %v481
  %v498 = vadd.f32 %v461, %v482
  %v499 = vadd.f32 %v462, %v483
  %v500 = vadd.f32 %v463, %v484
  %501 = vst.msk [vmem:[%s3 + $0x1] sm:$0xff] %vm19, %v485
  %502 = vst.msk [vmem:[%s3 + $0x49] sm:$0xff] %vm19, %v493
  %503 = vst.msk [vmem:[%s3 + $0x9] sm:$0xff] %vm19, %v486
  %504 = vst.msk [vmem:[%s3 + $0x51] sm:$0xff] %vm19, %v494
  %505 = vst.msk [vmem:[%s3 + $0x11] sm:$0xff] %vm19, %v487
  %506 = vst.msk [vmem:[%s3 + $0x59] sm:$0xff] %vm19, %v495
  %507 = vst.msk [vmem:[%s3 + $0x19] sm:$0xff] %vm19, %v488
  %508 = vst.msk [vmem:[%s3 + $0x61] sm:$0xff] %vm19, %v496
  %509 = vst.msk [vmem:[%s3 + $0x21] sm:$0xff] %vm19, %v489
  %510 = vst.msk [vmem:[%s3 + $0x69] sm:$0xff] %vm19, %v497
  %511 = vst.msk [vmem:[%s3 + $0x29] sm:$0xff] %vm19, %v490
  %512 = vst.msk [vmem:[%s3 + $0x71] sm:$0xff] %vm19, %v498
  %513 = vst.msk [vmem:[%s3 + $0x31] sm:$0xff] %vm19, %v491
  %514 = vst.msk [vmem:[%s3 + $0x79] sm:$0xff] %vm19, %v499
  %515 = vst.msk [vmem:[%s3 + $0x39] sm:$0xff] %vm19, %v492
  %516 = vst.msk [vmem:[%s3 + $0x81] sm:$0xff] %vm19, %v500
  // Predicated region
  $region14: #{dwconv_forward.1} parent=0 // pred_check
    _
  $region15: #{dwconv_forward.1} parent=0 // pred_check_branch
    %518 = sbr.rel (0) target = $region17
  $region16: #{dwconv_forward.1} parent=0 // pred_region
    _
  $region17: #{dwconv_forward.1} parent=0 // pred_fallthru
    _
  // Predicated region
  $region18: #{dwconv_forward.1} parent=0 // pred_check
    _
  $region19: #{dwconv_forward.1} parent=0 // pred_check_branch
    %520 = sbr.rel (0) target = $region21
  $region20: #{dwconv_forward.1} parent=0 // pred_region
    _
  $region21: #{dwconv_forward.1} parent=0 // pred_fallthru
    _

</llo_original>
